<compile_context>
chip_gen: v7x
topology: tpu7x:2x2x1
jax: 0.10.0
libtpu: 0.0.40
codegen_flags: <defaults>
</compile_context>

<pallas_src>
import functools
import math

import jax
import jax.numpy as jnp
from jax.experimental import pallas as pl
from jax.experimental.pallas import tpu as pltpu


def rmsnorm_ref(x, weight):
    # Pure-JAX reference mirroring the PyTorch forward (used for checking and
    # as the small-D fallback path).
    scale = x.shape[-1] ** -0.5
    nrm = jnp.sqrt(jnp.sum(jnp.square(x), axis=-1, keepdims=True)) * scale
    return x / jnp.maximum(nrm, 1e-8) * weight


def _rmsnorm_kernel(x_ref, w_ref, o_ref, *, scale):
    # x_ref: (block_rows, D) in input dtype, w_ref: (1, D), o_ref: (block_rows, D)
    x = x_ref[...].astype(jnp.float32)          # upcast in-register only
    w = w_ref[...].astype(jnp.float32)
    # torch.norm(x, dim=-1, keepdim=True) * dim**-0.5, clamped
    nrm = jnp.sqrt(jnp.sum(x * x, axis=-1, keepdims=True)) * scale
    nrm = jnp.maximum(nrm, 1e-8)
    # clamp first, then reciprocal -> exact PyTorch semantics, EUP slot for 1/x.
    inv = pl.reciprocal(nrm, approx=False)
    o_ref[...] = (x * inv * w).astype(o_ref.dtype)


def _sublane_multiple(dtype):
    itemsize = jnp.dtype(dtype).itemsize
    return {4: 8, 2: 16, 1: 32}.get(itemsize, 8)


def _round_up(v, m):
    return -(-v // m) * m


def _pick_block_rows(rows, D, dtype, vmem_budget_bytes):
    """Largest dtype-legal row tile whose double-buffered in+out blocks fit the budget."""
    sub = _sublane_multiple(dtype)
    itemsize = jnp.dtype(dtype).itemsize
    # 2 buffers for the input block + 2 for the output block per grid step.
    per_row_bytes = 4 * D * itemsize
    br = vmem_budget_bytes // per_row_bytes
    br = max(sub, min(int(br), 1024))
    # Keep the grid >= 2 steps when rows allow, so both v7x TensorCores get work.
    half_rows = _round_up(max(1, (rows + 1) // 2), sub)
    br = min(br, half_rows)
    # Never exceed the (sublane-padded) row count.
    br = min(br, _round_up(rows, sub))
    br = max(sub, (br // sub) * sub)
    return int(br)


def rmsnorm(x, weight, *, vmem_budget_bytes=24 * 1024 * 1024):
    """x: (..., D) float array, weight: (D,) float array.

    vmem_budget_bytes: bytes allowed for the double-buffered in+out row blocks.
    Default 24 MiB is safe on v7x (64 MiB physical VMEM); on v5e/v6e
    (128 MiB VMEM) it can be raised to ~48 MiB for very large D.
    """
    orig_shape = x.shape
    D = orig_shape[-1]
    if D % 128 != 0:
        # Not lane-dense: every store would be a masked partial store.
        # Tiny-D path -> plain XLA (production RetNet dims are multiples of 128).
        return rmsnorm_ref(x, weight.astype(x.dtype))

    rows = math.prod(orig_shape[:-1]) if len(orig_shape) > 1 else 1
    x2d = x.reshape(rows, D)
    w2d = weight.reshape(1, D)

    block_rows = _pick_block_rows(rows, D, x.dtype, vmem_budget_bytes)
    grid = (pl.cdiv(rows, block_rows),)
    scale = float(D) ** -0.5

    # Scoped-VMEM limit: ~2x the block budget, >= 32 MiB, capped well under the
    # v7x 64 MiB physical VMEM (and trivially fine on v5e/v6e's 128 MiB).
    vmem_limit = int(min(max(2 * vmem_budget_bytes, 32 * 1024 * 1024),
                         96 * 1024 * 1024))
    if vmem_limit > 56 * 1024 * 1024 and vmem_budget_bytes <= 24 * 1024 * 1024:
        vmem_limit = 48 * 1024 * 1024

    out2d = pl.pallas_call(
        functools.partial(_rmsnorm_kernel, scale=scale),
        out_shape=jax.ShapeDtypeStruct((rows, D), x.dtype),
        grid_spec=pltpu.PrefetchScalarGridSpec(
            num_scalar_prefetch=0,
            grid=grid,
            in_specs=[
                pl.BlockSpec((block_rows, D), lambda i: (i, 0)),
                # weight: single untiled VMEM-resident operand (no per-step DMA)
                pl.BlockSpec(memory_space=pltpu.MemorySpace.VMEM),
            ],
            out_specs=pl.BlockSpec((block_rows, D), lambda i: (i, 0)),
        ),
        compiler_params=pltpu.CompilerParams(
            dimension_semantics=("parallel",),
            vmem_limit_bytes=vmem_limit,
        ),
    )(x2d, w2d)

    return out2d.reshape(orig_shape)


if __name__ == "__main__":
    key = jax.random.PRNGKey(0)

    # f32 path: hidden dim a multiple of 128 so the output is lane-dense.
    B, S, D = 2, 8, 256
    x = jax.random.normal(key, (B, S, D), dtype=jnp.float32)
    weight = jnp.ones((D,), dtype=jnp.float32)  # matches nn.Parameter(torch.ones(dim))

    out = jax.block_until_ready(rmsnorm(x, weight))
    ref = rmsnorm_ref(x, weight)
    assert out.shape == x.shape
    assert jnp.allclose(out, ref, atol=1e-5, rtol=1e-5), "f32 mismatch vs reference"

    # bf16 path: exercises dtype-aware (multiple-of-16) row tiling and bf16 HBM
    # I/O with f32 math inside the kernel.
    xb = jax.random.normal(jax.random.PRNGKey(1), (2, 16, D), dtype=jnp.bfloat16)
    outb = jax.block_until_ready(rmsnorm(xb, weight))
    refb = rmsnorm_ref(xb.astype(jnp.float32), weight).astype(jnp.bfloat16)
    assert outb.shape == xb.shape
    assert jnp.allclose(outb.astype(jnp.float32), refb.astype(jnp.float32),
                        atol=2e-2, rtol=2e-2), "bf16 mismatch vs reference"

    print("KERNEL_OK")
</pallas_src>

<mosaic_0001>
module attributes {stable_mosaic.version = 11 : i64} {
  func.func @_rmsnorm_kernel(%arg0: i32, %arg1: memref<8x256xf32, #tpu.memory_space<vmem>>, %arg2: memref<1x256xf32, #tpu.memory_space<vmem>>, %arg3: memref<8x256xf32, #tpu.memory_space<vmem>>) attributes {dimension_semantics = [#tpu.dimension_semantics<parallel>], iteration_bounds = array<i64: 2>, scalar_prefetch = 0 : i64, scratch_operands = 0 : i64, tpu.core_type = #tpu.core_type<tc>, window_params = [{transform_indices = @transform_0, window_bounds = array<i64: 8, 256>}, {pipeline_mode = #tpu.pipeline_mode<synchronous>, transform_indices = @transform_1, window_bounds = array<i64: 1, 256>}, {transform_indices = @transform_2, window_bounds = array<i64: 8, 256>}]} {
    %c0 = arith.constant 0 : index
    %c0_0 = arith.constant 0 : index
    %0 = vector.load %arg1[%c0, %c0_0] : memref<8x256xf32, #tpu.memory_space<vmem>>, vector<8x256xf32>
    %c0_1 = arith.constant 0 : index
    %c0_2 = arith.constant 0 : index
    %1 = vector.load %arg2[%c0_1, %c0_2] : memref<1x256xf32, #tpu.memory_space<vmem>>, vector<1x256xf32>
    %2 = arith.mulf %0, %0 : vector<8x256xf32>
    %cst = arith.constant dense<0.000000e+00> : vector<8xf32>
    %3 = vector.multi_reduction <add>, %2, %cst [1] : vector<8x256xf32> to vector<8xf32>
    %4 = vector.shape_cast %3 : vector<8xf32> to vector<8x1xf32>
    %5 = math.sqrt %4 : vector<8x1xf32>
    %cst_3 = arith.constant 6.250000e-02 : f32
    %6 = vector.broadcast %cst_3 : f32 to vector<8x1xf32>
    %7 = arith.mulf %5, %6 : vector<8x1xf32>
    %cst_4 = arith.constant 9.99999993E-9 : f32
    %8 = vector.broadcast %cst_4 : f32 to vector<8x1xf32>
    %9 = arith.maximumf %7, %8 : vector<8x1xf32>
    %10 = tpu.reciprocal %9 : vector<8x1xf32> -> vector<8x1xf32>
    %11 = vector.broadcast %10 : vector<8x1xf32> to vector<8x256xf32>
    %12 = arith.mulf %0, %11 : vector<8x256xf32>
    %13 = vector.broadcast %1 : vector<1x256xf32> to vector<8x256xf32>
    %14 = arith.mulf %12, %13 : vector<8x256xf32>
    %c0_5 = arith.constant 0 : index
    %c0_6 = arith.constant 0 : index
    %15 = vector.load %arg3[%c0_5, %c0_6] : memref<8x256xf32, #tpu.memory_space<vmem>>, vector<8x256xf32>
    tpu.vector_store %arg3[%c0_5, %c0_6], %14 {strides = array<i32>} : memref<8x256xf32, #tpu.memory_space<vmem>>, vector<8x256xf32>,
    return
  }
  func.func @transform_0(%arg0: i32) -> (i32, i32) {
    %c0_i32 = arith.constant 0 : i32
    %c0_i32_0 = arith.constant 0 : i32
    return %arg0, %c0_i32 : i32, i32
  }
  func.func @transform_1(%arg0: i32) -> (i32, i32) {
    %c0_i32 = arith.constant 0 : i32
    %c0_i32_0 = arith.constant 0 : i32
    %c0_i32_1 = arith.constant 0 : i32
    return %c0_i32, %c0_i32_0 : i32, i32
  }
  func.func @transform_2(%arg0: i32) -> (i32, i32) {
    %c0_i32 = arith.constant 0 : i32
    %c0_i32_0 = arith.constant 0 : i32
    return %arg0, %c0_i32 : i32, i32
  }
}

</mosaic_0001>

<llo_original>
// kernel: tpu_custom_call.1
$region0: #{tpu_custom_call.1}
  #allocation0 [shape = 'u32[]', space=smem, size = 0x4, offset = 0x4, fixed_abs, tag = 'smem constant byte address 0x4 - core index']
  #allocation1 [shape = 'u32[144,128]{1,0:T(1,128)}', space=vmem, size = 0x12000, scoped, tag = 'internal scratch']
  %s0 = inlined_call_operand.hbm [shape: f32[16,256], index: 0, kind: input, shape index: {}]
  %s1 = inlined_call_operand.vmem [shape: f32[1,256], index: 1, kind: input, shape index: {}]
  %s2 = inlined_call_operand.hbm [shape: f32[16,256], index: 2, kind: output, shape index: {}]
  %s3 = sld [smem:[#allocation0]]
  $region45: #{tpu_custom_call.1} parent=0
    _
  %s5 = ssub.s32 1, %s3
  %s6 = scalar_select 0, %s5, %s3
  $region1: #{tpu_custom_call.1} parent=0
    #allocation2 [shape = 'u8[16384]{0}', space=vmem, size = 0x4000, scoped, tag = 'input window, operand 0']
    #allocation3 [shape = 's32[2]{0}', space=sflag, size = 0x8, scoped, tag = 'scoped memory for tpu_custom_call.1']
    #allocation4 [shape = 's32[2]{0}', space=sflag, size = 0x8, scoped, tag = 'scoped memory for tpu_custom_call.1']
    #allocation5 [shape = 'u8[16384]{0}', space=vmem, size = 0x4000, scoped, tag = 'output window, operand 0']
    %7 = vsyncpa [#allocation3], 0
    %s8 = scalar_lea.sflag [#allocation3], 1
    %9 = vsyncpa %s8, 0
    %10 = vsyncpa [#allocation4], 0
    %s11 = scalar_lea.sflag [#allocation4], 1
    %12 = vsyncpa %s11, 0
    loop: start=0, step=1, limit=4
    $region2: #{tpu_custom_call.1} parent=1 // loop_pre_header
      _
    $region3: #{tpu_custom_call.1} parent=1 // loop_header
      %s14 = sphi 0, %s18
      %p15 = scmp.ge.s32.totalorder %s14, 4
      %s24 = sphi 0, %s26
      %s27 = sphi 0, %s24
      %s28 = sphi 0, %s27
      %s44 = sphi 0, %s28
      %s48 = sphi 0, %s48
      %s50 = sphi 0, %s48
      %s51 = sphi 0, %s50
      %s65 = sphi 0, %s51
      %s71 = sphi 0, %s73
      %s74 = sphi 0, %s71
      %s75 = sphi 0, %s74
      %s91 = sphi 0, %s75
    $region4: #{tpu_custom_call.1} parent=1 // loop_header_branch
      %17 = sbr.rel (%p15) target = $region8
    $region5: #{tpu_custom_call.1} parent=1 // loop_body
      %s19 = ssub.s32 %s14, 1
      %s20 = ssub.s32 %s14, 2
      %s21 = sadd.s32 %s14, 1
      %s22 = ssub.s32 %s14, %s21
      %p23 = scmp.eq.s32.totalorder %s22, 0
      %s25 = sadd.s32 %s24, 1
      %s26 = scalar_select %p23, %s24, %s25
      %p29 = pneg %p23
      %p30 = scmp.eq.s32.totalorder %s14, 1
      %p31 = por %p29, %p30
      %p32 = scmp.ne.s32.totalorder %s24, %s27
      %p33 = scmp.eq.s32.totalorder %s14, 0
      %p34 = por %p32, %p33
      %p35 = scmp.ne.s32.totalorder %s24, %s27
      %p36 = scmp.eq.s32.totalorder %s19, 1
      %p37 = por %p35, %p36
      %p38 = scmp.ne.s32.totalorder %s27, %s28
      %p39 = scmp.eq.s32.totalorder %s19, 0
      %p40 = por %p38, %p39
      %p41 = scmp.ne.s32.totalorder %s27, %s28
      %p42 = scmp.eq.s32.totalorder %s20, 1
      %p43 = por %p41, %p42
      %p45 = scmp.ne.s32.totalorder %s28, %s44
      %p46 = scmp.eq.s32.totalorder %s20, 0
      %p47 = por %p45, %p46
      %s49 = sadd.s32 %s48, 1
      %p52 = scmp.eq.s32.totalorder %s14, 1
      %p53 = scmp.ne.s32.totalorder %s48, %s50
      %p54 = scmp.eq.s32.totalorder %s14, 0
      %p55 = por %p53, %p54
      %p56 = scmp.ne.s32.totalorder %s48, %s50
      %p57 = scmp.eq.s32.totalorder %s19, 1
      %p58 = por %p56, %p57
      %p59 = scmp.ne.s32.totalorder %s50, %s51
      %p60 = scmp.eq.s32.totalorder %s19, 0
      %p61 = por %p59, %p60
      %p62 = scmp.ne.s32.totalorder %s50, %s51
      %p63 = scmp.eq.s32.totalorder %s20, 1
      %p64 = por %p62, %p63
      %p66 = scmp.ne.s32.totalorder %s51, %s65
      %p67 = scmp.eq.s32.totalorder %s20, 0
      %p68 = por %p66, %p67
      %s69 = ssub.s32 %s14, %s21
      %p70 = scmp.eq.s32.totalorder %s69, 0
      %s72 = sadd.s32 %s71, 1
      %s73 = scalar_select %p70, %s71, %s72
      %p76 = pneg %p70
      %p77 = scmp.eq.s32.totalorder %s14, 1
      %p78 = por %p76, %p77
      %p79 = scmp.ne.s32.totalorder %s71, %s74
      %p80 = scmp.eq.s32.totalorder %s14, 0
      %p81 = por %p79, %p80
      %p82 = scmp.ne.s32.totalorder %s71, %s74
      %p83 = scmp.eq.s32.totalorder %s19, 1
      %p84 = por %p82, %p83
      %p85 = scmp.ne.s32.totalorder %s74, %s75
      %p86 = scmp.eq.s32.totalorder %s19, 0
      %p87 = por %p85, %p86
      %p88 = scmp.ne.s32.totalorder %s74, %s75
      %p89 = scmp.eq.s32.totalorder %s20, 1
      %p90 = por %p88, %p89
      %p92 = scmp.ne.s32.totalorder %s75, %s91
      %p93 = scmp.eq.s32.totalorder %s20, 0
      %p94 = por %p92, %p93
      %p95 = scmp.le.s32.totalorder 1, %s14
      %p96 = scmp.lt.s32.totalorder %s14, 3
      %p97 = pnand %p95, %p96
      %p98 = pneg %p97
      // Predicated region
      $region9: #{tpu_custom_call.1} parent=5 // pred_check
        _
      $region10: #{tpu_custom_call.1} parent=5 // pred_check_branch
        %100 = sbr.rel (%p97) target = $region12
      $region11: #{tpu_custom_call.1} parent=5 // pred_region
        %s101 = ssub.s32 %s14, 1
        // Predicated region
        $region13: #{tpu_custom_call.1} parent=11 // pred_check
          %p102 = pneg %p61
        $region14: #{tpu_custom_call.1} parent=11 // pred_check_branch
          %104 = sbr.rel (%p102) target = $region16
        $region15: #{tpu_custom_call.1} parent=11 // pred_region
          _
        $region16: #{tpu_custom_call.1} parent=11 // pred_fallthru
          _
      $region12: #{tpu_custom_call.1} parent=5 // pred_fallthru
        _
      %p105 = scmp.lt.s32.totalorder %s14, 2
      // Predicated region
      $region17: #{tpu_custom_call.1} parent=5 // pred_check
        %p106 = pneg %p105
      $region18: #{tpu_custom_call.1} parent=5 // pred_check_branch
        %108 = sbr.rel (%p106) target = $region20
      $region19: #{tpu_custom_call.1} parent=5 // pred_region
        // Predicated region
        $region21: #{tpu_custom_call.1} parent=19 // pred_check
          %p109 = pneg %p34
        $region22: #{tpu_custom_call.1} parent=19 // pred_check_branch
          %111 = sbr.rel (%p109) target = $region24
        $region23: #{tpu_custom_call.1} parent=19 // pred_region
          %s112 = sand.u32 %s24, 1
          %s113 = scalar_lea.sflag [#allocation3], %s112
          %s114 = sand.u32 %s24, 1
          %s115 = smul.addr %s114, 16
          %s116 = scalar_lea.vmem [#allocation2], %s115
          %s118 = ssub.s32 256, 256
          %119 = vsyncadd %s113, %s118
          %s120 = smul.addr %s14, 2
          %s121 = smul.addr %s120, 128
          %s122 = scalar_lea.hbm %s0, %s121
          %s124 = sshll.u32 %s116, 4
          %s125 = int_to_ptr.vmem [resolvable:$true] %s124
          %127 = dma.hbm_to_vmem [thread:$0]  %s122, 256, %s125, %s113
        $region24: #{tpu_custom_call.1} parent=19 // pred_fallthru
          _
      $region20: #{tpu_custom_call.1} parent=5 // pred_fallthru
        _
      %p128 = scmp.le.s32.totalorder 1, %s14
      %p129 = scmp.lt.s32.totalorder %s14, 3
      %p130 = pnand %p128, %p129
      %p131 = pneg %p130
      // Predicated region
      $region25: #{tpu_custom_call.1} parent=5 // pred_check
        _
      $region26: #{tpu_custom_call.1} parent=5 // pred_check_branch
        %133 = sbr.rel (%p130) target = $region28
      $region27: #{tpu_custom_call.1} parent=5 // pred_region
        %s134 = ssub.s32 %s14, 1
        %s135 = sand.u32 %s27, 1
        %s136 = scalar_lea.sflag [#allocation3], %s135
        %s137 = sand.u32 %s27, 1
        %s138 = smul.addr %s137, 16
        %s139 = scalar_lea.vmem [#allocation2], %s138
        // Predicated region
        $region29: #{tpu_custom_call.1} parent=27 // pred_check
          %p140 = pneg %p40
        $region30: #{tpu_custom_call.1} parent=27 // pred_check_branch
          %142 = sbr.rel (%p140) target = $region32
        $region31: #{tpu_custom_call.1} parent=27 // pred_region
          %143 = dma.done %s136, 256
        $region32: #{tpu_custom_call.1} parent=27 // pred_fallthru
          _
        %s144 = sand.u32 %s27, 1
        %s145 = scalar_lea.sflag [#allocation3], %s144
        %s146 = sand.u32 %s27, 1
        %s147 = smul.addr %s146, 16
        %s148 = scalar_lea.vmem [#allocation2], %s147
        %p149 = pneg %p40
        %p150 = pneg %p37
        %p151 = pneg %p61
        %p152 = pneg %p58
        %p153 = pneg %p87
        %p154 = pneg %p84
        %s155 = sand.u32 %s74, 1
        %s156 = scalar_lea.sflag [#allocation4], %s155
        %s157 = sand.u32 %s74, 1
        %s158 = smul.addr %s157, 16
        %s159 = scalar_lea.vmem [#allocation5], %s158
        %v160 = vld [vmem:[%s139] sm:$0xff]
        %v161 = vld [vmem:[%s139 + $0x8] sm:$0xff]
        %v162 = vld [vmem:[%s1] sm:$0x3]
        %v163 = vmul.f32 %v160, %v160
        %v164 = vmul.f32 %v161, %v161
        %v165 = vadd.f32 %v163, %v164
        %166 = vadd.xlane.f32.xlu0 %v165
        %v167 = vpop.xlane.xlu0 %166
        %v168 = vrsqrt.pop %v167
        %v169 = vmul.f32 %v167, %v168
        %vm170 = vcmp.eq.f32.partialorder %v167, inf
        %v171 = vsel %vm170, %v167, %v169
        %vm172 = vcmp.eq.f32.partialorder %v167, 0.0
        %v173 = vand.u32 %v167, 2147483648
        %v174 = vsel %vm172, %v173, %v171
        %v175 = vmul.f32 %v174, 0.0625
        %v176 = vmax.f32 %v175, 1e-08
        %v177 = vrcp.pop %v176
        %v178 = vmul.f32 %v160, %v177
        %v179 = vmul.f32 %v161, %v177
        %v181 = vlaneseq
        %v182 = vshrl.u32 %v181, 7
        %v183 = vsub.s32 0, %v182
        %v184 = vrot.slane %v162, %v183
        %v185 = vlaneseq
        %v186 = vshrl.u32 %v185, 7
        %v187 = vsub.s32 1, %v186
        %v188 = vrot.slane %v162, %v187
        %v191 = vmul.f32 %v178, %v184
        %v192 = vmul.f32 %v179, %v188
        %193 = vst [vmem:[%s159] sm:$0xff] %v191
        %194 = vst [vmem:[%s159 + $0x8] sm:$0xff] %v192
        %s195 = sand.u32 %s74, 1
        %s196 = scalar_lea.sflag [#allocation4], %s195
        %s197 = sand.u32 %s74, 1
        %s198 = smul.addr %s197, 16
        %s199 = scalar_lea.vmem [#allocation5], %s198
        // Predicated region
        $region33: #{tpu_custom_call.1} parent=27 // pred_check
          %p200 = pneg %p84
        $region34: #{tpu_custom_call.1} parent=27 // pred_check_branch
          %202 = sbr.rel (%p200) target = $region36
        $region35: #{tpu_custom_call.1} parent=27 // pred_region
          %s204 = ssub.s32 256, 256
          %205 = vsyncadd %s196, %s204
          %s206 = smul.addr %s19, 2
          %s207 = smul.addr %s206, 128
          %s208 = scalar_lea.hbm %s2, %s207
          %s210 = sshll.u32 %s199, 4
          %s211 = int_to_ptr.vmem [resolvable:$true] %s210
          %213 = dma.vmem_to_hbm [thread:$0]  %s211, 256, %s208, %s196
        $region36: #{tpu_custom_call.1} parent=27 // pred_fallthru
          _
      $region28: #{tpu_custom_call.1} parent=5 // pred_fallthru
        _
      %p214 = scmp.le.s32.totalorder 2, %s14
      // Predicated region
      $region37: #{tpu_custom_call.1} parent=5 // pred_check
        %p215 = pneg %p214
      $region38: #{tpu_custom_call.1} parent=5 // pred_check_branch
        %217 = sbr.rel (%p215) target = $region40
      $region39: #{tpu_custom_call.1} parent=5 // pred_region
        %s218 = ssub.s32 %s14, 2
        // Predicated region
        $region41: #{tpu_custom_call.1} parent=39 // pred_check
          %p219 = pneg %p90
        $region42: #{tpu_custom_call.1} parent=39 // pred_check_branch
          %221 = sbr.rel (%p219) target = $region44
        $region43: #{tpu_custom_call.1} parent=39 // pred_region
          %s222 = sand.u32 %s75, 1
          %s223 = scalar_lea.sflag [#allocation4], %s222
          %s224 = sand.u32 %s75, 1
          %s225 = smul.addr %s224, 16
          %s226 = scalar_lea.vmem [#allocation5], %s225
          %227 = dma.done %s223, 256
        $region44: #{tpu_custom_call.1} parent=39 // pred_fallthru
          _
      $region40: #{tpu_custom_call.1} parent=5 // pred_fallthru
        _
    $region6: #{tpu_custom_call.1} parent=1 // loop_footer
      %s18 = sadd.s32 1, %s14
    $region7: #{tpu_custom_call.1} parent=1 // loop_footer_branch
      %13 = sbr.rel target = $region3
    $region8: #{tpu_custom_call.1} parent=1 // loop_exit
      _
    %228 = vsyncpa [#allocation3], 1
    %s229 = scalar_lea.sflag [#allocation3], 1
    %230 = vsyncpa %s229, 1
    %231 = vsyncpa [#allocation4], 1
    %s232 = scalar_lea.sflag [#allocation4], 1
    %233 = vsyncpa %s232, 1

</llo_original>
